<compile_context>
chip_gen: v6e
topology: v6e:2x2x1
jax: 0.10.0
libtpu: 0.0.40
codegen_flags: <defaults>
</compile_context>

<pallas_src>
import jax
import jax.numpy as jnp
from jax.experimental import pallas as pl
from jax.experimental.pallas import tpu as pltpu

_EPS = 1e-5
_N_SPLIT = 2          # parallel pass-1 grid axis (both v7x TCs; harmless on 1-TC chips)


# --------------------------------------------------------------------------
# small helpers
# --------------------------------------------------------------------------
def _round_up(x, m):
    return (x + m - 1) // m * m


def _cdiv(a, b):
    return (a + b - 1) // b


_BUDGETS = None


def _hw_budgets():
    """(vmem_limit_bytes, per-step tile byte budget) picked per TPU generation."""
    global _BUDGETS
    if _BUDGETS is None:
        cap = 64 * 1024 * 1024
        try:
            info = pltpu.get_tpu_info()
            cap = int(getattr(info, "vmem_capacity_bytes", cap) or cap)
        except Exception:
            pass
        if cap >= 100 * 1024 * 1024:      # v5e / v6e: 128 MiB physical VMEM
            _BUDGETS = (100 * 1024 * 1024, 24 * 1024 * 1024)
        else:                             # v7x: 64 MiB physical VMEM
            _BUDGETS = (32 * 1024 * 1024, 16 * 1024 * 1024)
    return _BUDGETS


def _plan_tiles(m_rows, row_bytes, fixed_bytes, budget, n_split):
    """Pass-1 row tile: largest 128-multiple that fits the weight-aware budget."""
    avail = max(budget - fixed_bytes, 512 * 1024)
    tile = (avail // max(row_bytes, 1)) // 128 * 128
    tile = max(128, min(4096, tile))
    if n_split > 1:
        tile = min(tile, _round_up(_cdiv(m_rows, n_split), 128))
    tile = min(tile, _round_up(m_rows, 128))
    steps = _cdiv(m_rows, tile * n_split)
    return tile, steps, n_split * steps * tile


def _divisor_tile(mp, row_bytes, budget):
    """Pass-2 row tile: largest 128-multiple divisor of mp that fits the budget."""
    max_tile = (budget // max(row_bytes, 1)) // 128 * 128
    max_tile = max(128, min(8192, max_tile, mp))
    best, t = 128, 128
    while t <= max_tile:
        if mp % t == 0:
            best = t
        t += 128
    return best


def _im2col_3x3(x_nhwc, stride):
    """(N,H,W,C) -> lane-contiguous (N*Ho*Wo, 9*C) im2col (dtype preserved)."""
    N, H, W, C = x_nhwc.shape
    xp = jnp.pad(x_nhwc, ((0, 0), (1, 1), (1, 1), (0, 0)))
    Ho = (H + 2 - 3) // stride + 1
    Wo = (W + 2 - 3) // stride + 1
    cols = []
    for kh in range(3):
        for kw in range(3):
            cols.append(xp[:, kh:kh + stride * (Ho - 1) + 1:stride,
                           kw:kw + stride * (Wo - 1) + 1:stride, :])
    taps = jnp.concatenate(cols, axis=-1).reshape(N * Ho * Wo, 9 * C)
    return taps, Ho, Wo


def _pad2d(a, rows, cols, dtype):
    return jnp.pad(a, ((0, rows - a.shape[0]), (0, cols - a.shape[1]))).astype(dtype)


def _pack_w3x3(w_hwio, cin_p, cout_p):
    """(3,3,Cin,Cout) -> (9*cin_p, cout_p) bf16 with per-tap channel padding
    (matches the im2col tap order of a channel-padded input)."""
    kh, kw, cin, cout = w_hwio.shape
    wp = jnp.pad(w_hwio, ((0, 0), (0, 0), (0, cin_p - cin), (0, cout_p - cout)))
    return wp.reshape(kh * kw * cin_p, cout_p).astype(jnp.bfloat16)


def _pack_rows(vecs, cpad):
    """Stack per-channel 1-D vectors into an (8, cpad) f32 array (zero-filled)."""
    rows = [jnp.pad(v.astype(jnp.float32)[None, :],
                    ((0, 0), (0, cpad - v.shape[0]))) for v in vecs]
    if len(rows) < 8:
        rows.append(jnp.zeros((8 - len(rows), cpad), jnp.float32))
    return jnp.concatenate(rows, axis=0)


def _cparams(semantics):
    vmem_limit, _ = _hw_budgets()
    return pltpu.CompilerParams(dimension_semantics=semantics,
                                vmem_limit_bytes=vmem_limit)


# --------------------------------------------------------------------------
# pass-1 kernels: conv matmul(s) + per-channel sum / sum-of-squares (partial)
# --------------------------------------------------------------------------
def _stats_rows(accs):
    """(8, C) update: rows 2k / 2k+1 hold sum / sumsq of accs[k] over the tile."""
    rows = []
    for acc in accs:
        rows.append(jnp.sum(acc, axis=0, keepdims=True))
        rows.append(jnp.sum(acc * acc, axis=0, keepdims=True))
    if len(rows) < 8:
        rows.append(jnp.zeros((8 - len(rows), accs[0].shape[1]), jnp.float32))
    return jnp.concatenate(rows, axis=0)


def _conv_stats_kernel(taps_ref, w_ref, conv_ref, stats_ref):
    """Single (tile, K) x (K, C) bf16 matmul (f32 acc) + per-split BN stats."""
    acc = jnp.dot(taps_ref[...], w_ref[...], preferred_element_type=jnp.float32)
    conv_ref[...] = acc.astype(conv_ref.dtype)

    @pl.when(pl.program_id(1) == 0)
    def _():
        stats_ref[...] = jnp.zeros_like(stats_ref)

    stats_ref[...] += _stats_rows([acc])


def _conv_sc_stats_kernel(taps_ref, w_ref, xsc_ref, wsc_ref,
                          conv_ref, sc_ref, stats_ref):
    """conv2 (3x3) and the 1x1 projection shortcut fused, + both BN stats."""
    acc = jnp.dot(taps_ref[...], w_ref[...], preferred_element_type=jnp.float32)
    acc_sc = jnp.dot(xsc_ref[...], wsc_ref[...],
                     preferred_element_type=jnp.float32)
    conv_ref[...] = acc.astype(conv_ref.dtype)
    sc_ref[...] = acc_sc.astype(sc_ref.dtype)

    @pl.when(pl.program_id(1) == 0)
    def _():
        stats_ref[...] = jnp.zeros_like(stats_ref)

    stats_ref[...] += _stats_rows([acc, acc_sc])


# --------------------------------------------------------------------------
# pass-2 kernels: normalize (+ residual) (+ ReLU)
# --------------------------------------------------------------------------
def _bn(acc, stats_ref, affine_ref, slot, inv_m):
    """Normalize with batch stats held in stats_ref rows (2*slot, 2*slot+1)."""
    mean = stats_ref[2 * slot:2 * slot + 1, :] * inv_m
    # NOTE: E[x^2] - mean^2 in f32 (clamped); adequate at bf16-matmul precision.
    var = jnp.maximum(stats_ref[2 * slot + 1:2 * slot + 2, :] * inv_m
                      - mean * mean, 0.0)
    gamma = affine_ref[2 * slot:2 * slot + 1, :]
    beta = affine_ref[2 * slot + 1:2 * slot + 2, :]
    return (acc - mean) * jax.lax.rsqrt(var + _EPS) * gamma + beta


def _make_norm_kernel(inv_m, *, mode, apply_relu):
    def finish(y, out_ref):
        if apply_relu:
            y = jnp.maximum(y, 0.0)
        out_ref[...] = y.astype(out_ref.dtype)

    if mode == "plain":
        def kernel(conv_ref, stats_ref, affine_ref, out_ref):
            y = _bn(conv_ref[...].astype(jnp.float32), stats_ref, affine_ref,
                    0, inv_m)
            finish(y, out_ref)
    elif mode == "residual":
        def kernel(conv_ref, res_ref, stats_ref, affine_ref, out_ref):
            y = (_bn(conv_ref[...].astype(jnp.float32), stats_ref, affine_ref,
                     0, inv_m) + res_ref[...].astype(jnp.float32))
            finish(y, out_ref)
    elif mode == "proj":
        def kernel(conv_ref, sc_ref, stats_ref, affine_ref, out_ref):
            y = (_bn(conv_ref[...].astype(jnp.float32), stats_ref, affine_ref,
                     0, inv_m)
                 + _bn(sc_ref[...].astype(jnp.float32), stats_ref, affine_ref,
                       1, inv_m))
            finish(y, out_ref)
    else:
        raise ValueError(mode)
    return kernel


# --------------------------------------------------------------------------
# two-pass pipelines
# --------------------------------------------------------------------------
def _conv_bn_act(taps, wmat, gamma, beta, *, apply_relu, out_dtype):
    """Tiled two-pass Conv(one matmul) + BN (+ ReLU).  taps: (M, K).
    Returns a (M, Cp) array of out_dtype (padded channels are exact zeros)."""
    _, budget = _hw_budgets()
    M, K = taps.shape
    Cout = wmat.shape[1]
    Kp, Cp = _round_up(K, 128), _round_up(Cout, 128)

    n_split = _N_SPLIT if M > 128 else 1
    fixed1 = 2 * 2 * Kp * Cp + 2 * 4 * 8 * Cp          # 2x-buffered bf16 weights + stats blocks
    row1 = 4 * Kp + 4 * Cp + 4 * Cp                    # taps/out bf16 (x2 bufs) + f32 acc
    tile1, steps1, Mp = _plan_tiles(M, row1, fixed1, budget, n_split)

    taps_p = _pad2d(taps, Mp, Kp, jnp.bfloat16)
    w_p = _pad2d(wmat, Kp, Cp, jnp.bfloat16)

    conv, stats = pl.pallas_call(
        _conv_stats_kernel,
        grid=(n_split, steps1),
        in_specs=[pl.BlockSpec((tile1, Kp), lambda c, i: (c * steps1 + i, 0)),
                  pl.BlockSpec((Kp, Cp), lambda c, i: (0, 0))],
        out_specs=[pl.BlockSpec((tile1, Cp), lambda c, i: (c * steps1 + i, 0)),
                   pl.BlockSpec((8, Cp), lambda c, i: (c, 0))],
        out_shape=[jax.ShapeDtypeStruct((Mp, Cp), jnp.bfloat16),
                   jax.ShapeDtypeStruct((n_split * 8, Cp), jnp.float32)],
        compiler_params=_cparams(("parallel", "arbitrary")),
    )(taps_p, w_p)

    stats_total = stats.reshape(n_split, 8, Cp).sum(axis=0)   # tiny partial-stat reduce

    out_bytes = jnp.dtype(out_dtype).itemsize
    row2 = 4 * Cp + 2 * out_bytes * Cp + 16 * Cp
    tile2 = _divisor_tile(Mp, row2, budget)
    out = pl.pallas_call(
        _make_norm_kernel(1.0 / M, mode="plain", apply_relu=apply_relu),
        grid=(Mp // tile2,),
        in_specs=[pl.BlockSpec((tile2, Cp), lambda i: (i, 0)),
                  pl.BlockSpec((8, Cp), lambda i: (0, 0)),
                  pl.BlockSpec((8, Cp), lambda i: (0, 0))],
        out_specs=pl.BlockSpec((tile2, Cp), lambda i: (i, 0)),
        out_shape=jax.ShapeDtypeStruct((Mp, Cp), out_dtype),
        compiler_params=_cparams(("parallel",)),
    )(conv, stats_total, _pack_rows([gamma, beta], Cp))

    return out[:M]


def _final_stage(h_p, x, params, *, stride, projection, cout):
    """conv2(3x3,s1,p1)+BN2, shortcut (1x1 conv+BN or identity), add, ReLU.
    h_p: (N,Ho,Wo,Cp) bf16 with zero-padded channels.  x: (N,H,W,Cin) bf16."""
    _, budget = _hw_budgets()
    N, Ho, Wo, Cp = h_p.shape
    M = N * Ho * Wo
    taps, _, _ = _im2col_3x3(h_p, 1)          # (M, 9*Cp) bf16; 9*Cp % 128 == 0
    Kp = taps.shape[1]
    w2 = _pack_w3x3(params["w2"], Cp, Cp)

    n_split = _N_SPLIT if M > 128 else 1

    if projection:
        Cin = x.shape[-1]
        Cip = _round_up(Cin, 128)
        xsc = x[:, ::stride, ::stride, :].reshape(M, Cin)
        wsc = params["w_sc"].reshape(Cin, cout)

        fixed1 = 2 * 2 * (Kp * Cp + Cip * Cp) + 2 * 4 * 8 * Cp
        row1 = 4 * Kp + 4 * Cip + 8 * Cp + 8 * Cp
        tile1, steps1, Mp = _plan_tiles(M, row1, fixed1, budget, n_split)

        taps_p = _pad2d(taps, Mp, Kp, jnp.bfloat16)
        xsc_p = _pad2d(xsc, Mp, Cip, jnp.bfloat16)
        wsc_p = _pad2d(wsc, Cip, Cp, jnp.bfloat16)

        conv, sc, stats = pl.pallas_call(
            _conv_sc_stats_kernel,
            grid=(n_split, steps1),
            in_specs=[pl.BlockSpec((tile1, Kp), lambda c, i: (c * steps1 + i, 0)),
                      pl.BlockSpec((Kp, Cp), lambda c, i: (0, 0)),
                      pl.BlockSpec((tile1, Cip), lambda c, i: (c * steps1 + i, 0)),
                      pl.BlockSpec((Cip, Cp), lambda c, i: (0, 0))],
            out_specs=[pl.BlockSpec((tile1, Cp), lambda c, i: (c * steps1 + i, 0)),
                       pl.BlockSpec((tile1, Cp), lambda c, i: (c * steps1 + i, 0)),
                       pl.BlockSpec((8, Cp), lambda c, i: (c, 0))],
            out_shape=[jax.ShapeDtypeStruct((Mp, Cp), jnp.bfloat16),
                       jax.ShapeDtypeStruct((Mp, Cp), jnp.bfloat16),
                       jax.ShapeDtypeStruct((n_split * 8, Cp), jnp.float32)],
            compiler_params=_cparams(("parallel", "arbitrary")),
        )(taps_p, w2, xsc_p, wsc_p)

        stats_total = stats.reshape(n_split, 8, Cp).sum(axis=0)
        affine = _pack_rows([params["gamma2"], params["beta2"],
                             params["gamma_sc"], params["beta_sc"]], Cp)

        row2 = 8 * Cp + 8 * Cp + 24 * Cp
        tile2 = _divisor_tile(Mp, row2, budget)
        out = pl.pallas_call(
            _make_norm_kernel(1.0 / M, mode="proj", apply_relu=True),
            grid=(Mp // tile2,),
            in_specs=[pl.BlockSpec((tile2, Cp), lambda i: (i, 0)),
                      pl.BlockSpec((tile2, Cp), lambda i: (i, 0)),
                      pl.BlockSpec((8, Cp), lambda i: (0, 0)),
                      pl.BlockSpec((8, Cp), lambda i: (0, 0))],
            out_specs=pl.BlockSpec((tile2, Cp), lambda i: (i, 0)),
            out_shape=jax.ShapeDtypeStruct((Mp, Cp), jnp.float32),
            compiler_params=_cparams(("parallel",)),
        )(conv, sc, stats_total, affine)
    else:
        res = x.reshape(M, x.shape[-1])

        fixed1 = 2 * 2 * Kp * Cp + 2 * 4 * 8 * Cp
        row1 = 4 * Kp + 4 * Cp + 4 * Cp
        tile1, steps1, Mp = _plan_tiles(M, row1, fixed1, budget, n_split)

        taps_p = _pad2d(taps, Mp, Kp, jnp.bfloat16)
        res_p = _pad2d(res, Mp, Cp, jnp.bfloat16)

        conv, stats = pl.pallas_call(
            _conv_stats_kernel,
            grid=(n_split, steps1),
            in_specs=[pl.BlockSpec((tile1, Kp), lambda c, i: (c * steps1 + i, 0)),
                      pl.BlockSpec((Kp, Cp), lambda c, i: (0, 0))],
            out_specs=[pl.BlockSpec((tile1, Cp), lambda c, i: (c * steps1 + i, 0)),
                       pl.BlockSpec((8, Cp), lambda c, i: (c, 0))],
            out_shape=[jax.ShapeDtypeStruct((Mp, Cp), jnp.bfloat16),
                       jax.ShapeDtypeStruct((n_split * 8, Cp), jnp.float32)],
            compiler_params=_cparams(("parallel", "arbitrary")),
        )(taps_p, w2)

        stats_total = stats.reshape(n_split, 8, Cp).sum(axis=0)
        affine = _pack_rows([params["gamma2"], params["beta2"]], Cp)

        row2 = 4 * Cp + 4 * Cp + 8 * Cp + 16 * Cp
        tile2 = _divisor_tile(Mp, row2, budget)
        out = pl.pallas_call(
            _make_norm_kernel(1.0 / M, mode="residual", apply_relu=True),
            grid=(Mp // tile2,),
            in_specs=[pl.BlockSpec((tile2, Cp), lambda i: (i, 0)),
                      pl.BlockSpec((tile2, Cp), lambda i: (i, 0)),
                      pl.BlockSpec((8, Cp), lambda i: (0, 0)),
                      pl.BlockSpec((8, Cp), lambda i: (0, 0))],
            out_specs=pl.BlockSpec((tile2, Cp), lambda i: (i, 0)),
            out_shape=jax.ShapeDtypeStruct((Mp, Cp), jnp.float32),
            compiler_params=_cparams(("parallel",)),
        )(conv, res_p, stats_total, affine)

    return out[:M, :cout].reshape(N, Ho, Wo, cout)


# --------------------------------------------------------------------------
# public module-equivalent API
# --------------------------------------------------------------------------
def init_residual_block_params(key, inchannel, outchannel, stride):
    """Deterministic synthetic parameters (shapes match the PyTorch module)."""
    k1, k2, k3 = jax.random.split(key, 3)
    params = {
        "w1": 0.1 * jax.random.normal(k1, (3, 3, inchannel, outchannel), jnp.float32),
        "gamma1": jnp.ones((outchannel,), jnp.float32),
        "beta1": jnp.zeros((outchannel,), jnp.float32),
        "w2": 0.1 * jax.random.normal(k2, (3, 3, outchannel, outchannel), jnp.float32),
        "gamma2": jnp.ones((outchannel,), jnp.float32),
        "beta2": jnp.zeros((outchannel,), jnp.float32),
    }
    if stride != 1 or inchannel != outchannel:
        params["w_sc"] = 0.1 * jax.random.normal(
            k3, (1, 1, inchannel, outchannel), jnp.float32)
        params["gamma_sc"] = jnp.ones((outchannel,), jnp.float32)
        params["beta_sc"] = jnp.zeros((outchannel,), jnp.float32)
    return params


def residual_block(x_nchw, params, *, inchannel, outchannel, stride=1):
    """Forward pass. Input/output are NCHW like the PyTorch module."""
    # NCHW -> NHWC and cast to bf16 up front so the XLA-side im2col materializes
    # taps in bf16 (halves tap HBM traffic versus f32-then-recast).
    x = jnp.transpose(x_nchw, (0, 2, 3, 1)).astype(jnp.bfloat16)
    N = x.shape[0]

    # left branch, first half: conv1 + BN1 + ReLU (two-pass tiled pipeline)
    taps1, Ho, Wo = _im2col_3x3(x, stride)
    w1 = params["w1"].reshape(9 * inchannel, outchannel)
    h = _conv_bn_act(taps1, w1, params["gamma1"], params["beta1"],
                     apply_relu=True, out_dtype=jnp.bfloat16)
    Cp = h.shape[1]
    h_p = h.reshape(N, Ho, Wo, Cp)        # bf16, channel-padded (padding == 0)

    # conv2 + BN2 + shortcut (+BN) + residual add + final ReLU, fused
    projection = (stride != 1) or (inchannel != outchannel)
    out = _final_stage(h_p, x, params, stride=stride,
                       projection=projection, cout=outchannel)

    return jnp.transpose(out, (0, 3, 1, 2)).astype(jnp.float32)   # back to NCHW


# --------------------------------------------------------------------------
# pure-JAX reference (for a loose numerical sanity check)
# --------------------------------------------------------------------------
def _reference_block(x_nchw, params, *, inchannel, outchannel, stride):
    x = jnp.transpose(x_nchw, (0, 2, 3, 1)).astype(jnp.float32)

    def conv(inp, w, s, pad):
        return jax.lax.conv_general_dilated(
            inp, w, window_strides=(s, s), padding=[(pad, pad), (pad, pad)],
            dimension_numbers=("NHWC", "HWIO", "NHWC"))

    def bn(y, gamma, beta):
        mean = jnp.mean(y, axis=(0, 1, 2), keepdims=True)
        var = jnp.mean((y - mean) ** 2, axis=(0, 1, 2), keepdims=True)
        return (y - mean) * jax.lax.rsqrt(var + _EPS) * gamma + beta

    h = jax.nn.relu(bn(conv(x, params["w1"], stride, 1),
                       params["gamma1"], params["beta1"]))
    left = bn(conv(h, params["w2"], 1, 1), params["gamma2"], params["beta2"])
    if stride != 1 or inchannel != outchannel:
        sc = bn(conv(x, params["w_sc"], stride, 0),
                params["gamma_sc"], params["beta_sc"])
    else:
        sc = x
    return jnp.transpose(jax.nn.relu(left + sc), (0, 3, 1, 2))


if __name__ == "__main__":
    key = jax.random.PRNGKey(0)
    kx, kp = jax.random.split(key)

    N, Cin, H, W = 2, 4, 16, 16
    Cout = 8
    x = jax.random.normal(kx, (N, Cin, H, W), jnp.float32)   # NCHW like PyTorch

    # (inchannel, outchannel, stride): projection / strided-projection / identity
    for cin, cout, stride in [(Cin, Cout, 1), (Cin, Cout, 2), (Cin, Cin, 1)]:
        p = init_residual_block_params(kp, cin, cout, stride)
        y = residual_block(x, p, inchannel=cin, outchannel=cout, stride=stride)
        jax.block_until_ready(y)
        ho = (H + 2 - 3) // stride + 1
        assert y.shape == (N, cout, ho, ho), y.shape
        assert bool(jnp.all(jnp.isfinite(y)))
        ref = _reference_block(x, p, inchannel=cin, outchannel=cout, stride=stride)
        err = float(jnp.max(jnp.abs(y - ref)))
        assert err < 0.25, f"max abs err {err}"   # bf16-matmul / bf16-activation tolerance

    print("KERNEL_OK")
</pallas_src>

<mosaic_0001>
module attributes {stable_mosaic.version = 11 : i64} {
  func.func @_conv_stats_kernel(%arg0: i32, %arg1: i32, %arg2: memref<256x128xbf16, #tpu.memory_space<vmem>>, %arg3: memref<128x128xbf16, #tpu.memory_space<vmem>>, %arg4: memref<256x128xbf16, #tpu.memory_space<vmem>>, %arg5: memref<8x128xf32, #tpu.memory_space<vmem>>) attributes {dimension_semantics = [#tpu.dimension_semantics<parallel>, #tpu.dimension_semantics<arbitrary>], iteration_bounds = array<i64: 2, 1>, scalar_prefetch = 0 : i64, scratch_operands = 0 : i64, tpu.core_type = #tpu.core_type<tc>, window_params = [{transform_indices = @transform_0, window_bounds = array<i64: 256, 128>}, {pipeline_mode = #tpu.pipeline_mode<synchronous>, transform_indices = @transform_1, window_bounds = array<i64: 128, 128>}, {transform_indices = @transform_2, window_bounds = array<i64: 256, 128>}, {transform_indices = @transform_3, window_bounds = array<i64: 8, 128>}]} {
    %c0 = arith.constant 0 : index
    %c0_0 = arith.constant 0 : index
    %0 = vector.load %arg2[%c0, %c0_0] : memref<256x128xbf16, #tpu.memory_space<vmem>>, vector<256x128xbf16>
    %c0_1 = arith.constant 0 : index
    %c0_2 = arith.constant 0 : index
    %1 = vector.load %arg3[%c0_1, %c0_2] : memref<128x128xbf16, #tpu.memory_space<vmem>>, vector<128x128xbf16>
    %cst = arith.constant dense<0.000000e+00> : vector<256x128xf32>
    %2 = tpu.matmul %0, %1, %cst {dimension_numbers = #tpu.dot_dimension_numbers<[1], [0], [0], [1], [0, 0, 1, 1], [], []>} : vector<256x128xbf16>, vector<128x128xbf16>, vector<256x128xf32> -> vector<256x128xf32>
    %3 = arith.truncf %2 : vector<256x128xf32> to vector<256x128xbf16>
    %c0_3 = arith.constant 0 : index
    %c0_4 = arith.constant 0 : index
    %4 = vector.load %arg4[%c0_3, %c0_4] : memref<256x128xbf16, #tpu.memory_space<vmem>>, vector<256x128xbf16>
    tpu.vector_store %arg4[%c0_3, %c0_4], %3 {strides = array<i32>} : memref<256x128xbf16, #tpu.memory_space<vmem>>, vector<256x128xbf16>,
    %c0_i32 = arith.constant 0 : i32
    %5 = arith.cmpi eq, %arg1, %c0_i32 : i32
    %6 = arith.extui %5 : i1 to i32
    %c0_i32_5 = arith.constant 0 : i32
    %7 = arith.cmpi ne, %6, %c0_i32_5 : i32
    scf.if %7 {
      %cst_13 = arith.constant 0.000000e+00 : f32
      %18 = vector.broadcast %cst_13 : f32 to vector<8x128xf32>
      %c0_14 = arith.constant 0 : index
      %c0_15 = arith.constant 0 : index
      %19 = vector.load %arg5[%c0_14, %c0_15] : memref<8x128xf32, #tpu.memory_space<vmem>>, vector<8x128xf32>
      tpu.vector_store %arg5[%c0_14, %c0_15], %18 {strides = array<i32>} : memref<8x128xf32, #tpu.memory_space<vmem>>, vector<8x128xf32>,
    } else {
    }
    %c0_6 = arith.constant 0 : index
    %c0_7 = arith.constant 0 : index
    %8 = vector.load %arg5[%c0_6, %c0_7] : memref<8x128xf32, #tpu.memory_space<vmem>>, vector<8x128xf32>
    %cst_8 = arith.constant dense<0.000000e+00> : vector<128xf32>
    %9 = vector.multi_reduction <add>, %2, %cst_8 [0] : vector<256x128xf32> to vector<128xf32>
    %10 = vector.shape_cast %9 : vector<128xf32> to vector<1x128xf32>
    %11 = arith.mulf %2, %2 : vector<256x128xf32>
    %cst_9 = arith.constant dense<0.000000e+00> : vector<128xf32>
    %12 = vector.multi_reduction <add>, %11, %cst_9 [0] : vector<256x128xf32> to vector<128xf32>
    %13 = vector.shape_cast %12 : vector<128xf32> to vector<1x128xf32>
    %cst_10 = arith.constant 0.000000e+00 : f32
    %14 = vector.broadcast %cst_10 : f32 to vector<6x128xf32>
    %15 = tpu.concatenate %10, %13, %14 in 0 : vector<1x128xf32>, vector<1x128xf32>, vector<6x128xf32> -> vector<8x128xf32>
    %16 = arith.addf %8, %15 : vector<8x128xf32>
    %c0_11 = arith.constant 0 : index
    %c0_12 = arith.constant 0 : index
    %17 = vector.load %arg5[%c0_11, %c0_12] : memref<8x128xf32, #tpu.memory_space<vmem>>, vector<8x128xf32>
    tpu.vector_store %arg5[%c0_11, %c0_12], %16 {strides = array<i32>} : memref<8x128xf32, #tpu.memory_space<vmem>>, vector<8x128xf32>,
    return
  }
  func.func @transform_0(%arg0: i32, %arg1: i32) -> (i32, i32) {
    %c1_i32 = arith.constant 1 : i32
    %0 = arith.muli %arg0, %c1_i32 : i32
    %1 = arith.addi %0, %arg1 : i32
    %c0_i32 = arith.constant 0 : i32
    %c0_i32_0 = arith.constant 0 : i32
    return %1, %c0_i32 : i32, i32
  }
  func.func @transform_1(%arg0: i32, %arg1: i32) -> (i32, i32) {
    %c0_i32 = arith.constant 0 : i32
    %c0_i32_0 = arith.constant 0 : i32
    %c0_i32_1 = arith.constant 0 : i32
    return %c0_i32, %c0_i32_0 : i32, i32
  }
  func.func @transform_2(%arg0: i32, %arg1: i32) -> (i32, i32) {
    %c1_i32 = arith.constant 1 : i32
    %0 = arith.muli %arg0, %c1_i32 : i32
    %1 = arith.addi %0, %arg1 : i32
    %c0_i32 = arith.constant 0 : i32
    %c0_i32_0 = arith.constant 0 : i32
    return %1, %c0_i32 : i32, i32
  }
  func.func @transform_3(%arg0: i32, %arg1: i32) -> (i32, i32) {
    %c0_i32 = arith.constant 0 : i32
    %c0_i32_0 = arith.constant 0 : i32
    return %arg0, %c0_i32 : i32, i32
  }
}

</mosaic_0001>

<llo_original>
// kernel: tpu_custom_call.1
$region0: #{tpu_custom_call.1}
  #allocation0 [shape = 'u32[]', space=smem, size = 0x4, offset = 0x4, fixed_abs, tag = 'smem constant byte address 0x4 - core index']
  #allocation1 [shape = 'u32[144,128]{1,0:T(1,128)}', space=vmem, size = 0x12000, scoped, tag = 'internal scratch']
  %s0 = inlined_call_operand.hbm [shape: bf16[512,128], index: 0, kind: input, shape index: {}]
  %s1 = inlined_call_operand.hbm [shape: bf16[128,128], index: 1, kind: input, shape index: {}]
  %s2 = inlined_call_operand.hbm [shape: bf16[512,128], index: 2, kind: output, shape index: {0}]
  %s3 = inlined_call_operand.hbm [shape: f32[16,128], index: 3, kind: output, shape index: {1}]
  %4 = xla_tuple %s2, %s3
  %s5 = sld [smem:[#allocation0]]
  $region61: #{tpu_custom_call.1} parent=0
    _
  %s7 = ssub.s32 1, %s5
  %s8 = scalar_select 0, %s7, %s5
  $region1: #{tpu_custom_call.1} parent=0
    #allocation2 [shape = 'u8[131072]{0}', space=vmem, size = 0x20000, scoped, tag = 'input window, operand 0']
    #allocation3 [shape = 's32[2]{0}', space=sflag, size = 0x8, scoped, tag = 'scoped memory for tpu_custom_call.1']
    #allocation4 [shape = 's32[2]{0}', space=sflag, size = 0x8, scoped, tag = 'scoped memory for tpu_custom_call.1']
    #allocation5 [shape = 'u8[32768]{0}', space=vmem, size = 0x8000, scoped, tag = 'input window, operand 1, single buffered']
    #allocation6 [shape = 's32[1]{0}', space=sflag, size = 0x4, scoped, tag = 'scoped memory for tpu_custom_call.1']
    #allocation7 [shape = 'u8[131072]{0}', space=vmem, size = 0x20000, scoped, tag = 'output window, operand 0']
    #allocation8 [shape = 'u8[8192]{0}', space=vmem, size = 0x2000, scoped, tag = 'output window, operand 1']
    #allocation9 [shape = 's32[2]{0}', space=sflag, size = 0x8, scoped, tag = 'scoped memory for tpu_custom_call.1']
    %9 = vsyncpa [#allocation3], 0
    %s10 = scalar_lea.sflag [#allocation3], 1
    %11 = vsyncpa %s10, 0
    %12 = vsyncpa [#allocation6], 0
    %13 = vsyncpa [#allocation4], 0
    %s14 = scalar_lea.sflag [#allocation4], 1
    %15 = vsyncpa %s14, 0
    %16 = vsyncpa [#allocation9], 0
    %s17 = scalar_lea.sflag [#allocation9], 1
    %18 = vsyncpa %s17, 0
    loop: start=0, step=1, limit=4
    $region2: #{tpu_custom_call.1} parent=1 // loop_pre_header
      _
    $region3: #{tpu_custom_call.1} parent=1 // loop_header
      %s20 = sphi 0, %s24
      %p21 = scmp.ge.s32.totalorder %s20, 4
      %s27 = sphi 0, %s39
      %s28 = sphi 0, %s35
      %s29 = sphi 0, %s27
      %s30 = sphi 0, %s28
      %s31 = sphi 0, %s29
      %s32 = sphi 0, %s30
      %s44 = sphi 0, %s46
      %s47 = sphi 0, %s44
      %s48 = sphi 0, %s47
      %s64 = sphi 0, %s48
      %s68 = sphi 0, %s68
      %s70 = sphi 0, %s68
      %s71 = sphi 0, %s70
      %s85 = sphi 0, %s71
      %s93 = sphi 0, %s95
      %s96 = sphi 0, %s93
      %s97 = sphi 0, %s96
      %s113 = sphi 0, %s97
      %s119 = sphi 0, %s121
      %s122 = sphi 0, %s119
      %s123 = sphi 0, %s122
      %s139 = sphi 0, %s123
    $region4: #{tpu_custom_call.1} parent=1 // loop_header_branch
      %23 = sbr.rel (%p21) target = $region8
    $region5: #{tpu_custom_call.1} parent=1 // loop_body
      %s25 = ssub.s32 %s20, 1
      %s26 = ssub.s32 %s20, 2
      %s33 = sadd.s32 1, %s28
      %p34 = scmp.ge.s32.totalorder %s33, 1
      %s35 = scalar_select %p34, 0, %s33
      %s36 = sadd.s32 1, %s27
      %s37 = scalar_select %p34, %s36, %s27
      %p38 = scmp.ge.s32.totalorder %s37, 2
      %s39 = scalar_select %p38, 0, %s37
      %s40 = sadd.s32 %s27, %s28
      %s41 = sadd.s32 %s39, %s35
      %s42 = ssub.s32 %s40, %s41
      %p43 = scmp.eq.s32.totalorder %s42, 0
      %s45 = sadd.s32 %s44, 1
      %s46 = scalar_select %p43, %s44, %s45
      %p49 = pneg %p43
      %p50 = scmp.eq.s32.totalorder %s20, 1
      %p51 = por %p49, %p50
      %p52 = scmp.ne.s32.totalorder %s44, %s47
      %p53 = scmp.eq.s32.totalorder %s20, 0
      %p54 = por %p52, %p53
      %p55 = scmp.ne.s32.totalorder %s44, %s47
      %p56 = scmp.eq.s32.totalorder %s25, 1
      %p57 = por %p55, %p56
      %p58 = scmp.ne.s32.totalorder %s47, %s48
      %p59 = scmp.eq.s32.totalorder %s25, 0
      %p60 = por %p58, %p59
      %p61 = scmp.ne.s32.totalorder %s47, %s48
      %p62 = scmp.eq.s32.totalorder %s26, 1
      %p63 = por %p61, %p62
      %p65 = scmp.ne.s32.totalorder %s48, %s64
      %p66 = scmp.eq.s32.totalorder %s26, 0
      %p67 = por %p65, %p66
      %s69 = sadd.s32 %s68, 1
      %p72 = scmp.eq.s32.totalorder %s20, 1
      %p73 = scmp.ne.s32.totalorder %s68, %s70
      %p74 = scmp.eq.s32.totalorder %s20, 0
      %p75 = por %p73, %p74
      %p76 = scmp.ne.s32.totalorder %s68, %s70
      %p77 = scmp.eq.s32.totalorder %s25, 1
      %p78 = por %p76, %p77
      %p79 = scmp.ne.s32.totalorder %s70, %s71
      %p80 = scmp.eq.s32.totalorder %s25, 0
      %p81 = por %p79, %p80
      %p82 = scmp.ne.s32.totalorder %s70, %s71
      %p83 = scmp.eq.s32.totalorder %s26, 1
      %p84 = por %p82, %p83
      %p86 = scmp.ne.s32.totalorder %s71, %s85
      %p87 = scmp.eq.s32.totalorder %s26, 0
      %p88 = por %p86, %p87
      %s89 = sadd.s32 %s27, %s28
      %s90 = sadd.s32 %s39, %s35
      %s91 = ssub.s32 %s89, %s90
      %p92 = scmp.eq.s32.totalorder %s91, 0
      %s94 = sadd.s32 %s93, 1
      %s95 = scalar_select %p92, %s93, %s94
      %p98 = pneg %p92
      %p99 = scmp.eq.s32.totalorder %s20, 1
      %p100 = por %p98, %p99
      %p101 = scmp.ne.s32.totalorder %s93, %s96
      %p102 = scmp.eq.s32.totalorder %s20, 0
      %p103 = por %p101, %p102
      %p104 = scmp.ne.s32.totalorder %s93, %s96
      %p105 = scmp.eq.s32.totalorder %s25, 1
      %p106 = por %p104, %p105
      %p107 = scmp.ne.s32.totalorder %s96, %s97
      %p108 = scmp.eq.s32.totalorder %s25, 0
      %p109 = por %p107, %p108
      %p110 = scmp.ne.s32.totalorder %s96, %s97
      %p111 = scmp.eq.s32.totalorder %s26, 1
      %p112 = por %p110, %p111
      %p114 = scmp.ne.s32.totalorder %s97, %s113
      %p115 = scmp.eq.s32.totalorder %s26, 0
      %p116 = por %p114, %p115
      %s117 = ssub.s32 %s27, %s39
      %p118 = scmp.eq.s32.totalorder %s117, 0
      %s120 = sadd.s32 %s119, 1
      %s121 = scalar_select %p118, %s119, %s120
      %p124 = pneg %p118
      %p125 = scmp.eq.s32.totalorder %s20, 1
      %p126 = por %p124, %p125
      %p127 = scmp.ne.s32.totalorder %s119, %s122
      %p128 = scmp.eq.s32.totalorder %s20, 0
      %p129 = por %p127, %p128
      %p130 = scmp.ne.s32.totalorder %s119, %s122
      %p131 = scmp.eq.s32.totalorder %s25, 1
      %p132 = por %p130, %p131
      %p133 = scmp.ne.s32.totalorder %s122, %s123
      %p134 = scmp.eq.s32.totalorder %s25, 0
      %p135 = por %p133, %p134
      %p136 = scmp.ne.s32.totalorder %s122, %s123
      %p137 = scmp.eq.s32.totalorder %s26, 1
      %p138 = por %p136, %p137
      %p140 = scmp.ne.s32.totalorder %s123, %s139
      %p141 = scmp.eq.s32.totalorder %s26, 0
      %p142 = por %p140, %p141
      %p143 = scmp.le.s32.totalorder 1, %s20
      %p144 = scmp.lt.s32.totalorder %s20, 3
      %p145 = pnand %p143, %p144
      %p146 = pneg %p145
      // Predicated region
      $region9: #{tpu_custom_call.1} parent=5 // pred_check
        _
      $region10: #{tpu_custom_call.1} parent=5 // pred_check_branch
        %148 = sbr.rel (%p145) target = $region12
      $region11: #{tpu_custom_call.1} parent=5 // pred_region
        %s149 = ssub.s32 %s20, 1
        // Predicated region
        $region13: #{tpu_custom_call.1} parent=11 // pred_check
          %p150 = pneg %p81
        $region14: #{tpu_custom_call.1} parent=11 // pred_check_branch
          %152 = sbr.rel (%p150) target = $region16
        $region15: #{tpu_custom_call.1} parent=11 // pred_region
          %s154 = ssub.s32 1024, 1024
          %155 = vsyncadd [#allocation6], %s154
          %s156 = sshll.u32 [#allocation5], 4
          %s157 = int_to_ptr.vmem [resolvable:$true] %s156
          %162 = dma.hbm_to_vmem [thread:$0]  %s1, 1024, %s157, [#allocation6], 64, 64, 4
        $region16: #{tpu_custom_call.1} parent=11 // pred_fallthru
          _
      $region12: #{tpu_custom_call.1} parent=5 // pred_fallthru
        _
      %p163 = scmp.lt.s32.totalorder %s20, 2
      // Predicated region
      $region17: #{tpu_custom_call.1} parent=5 // pred_check
        %p164 = pneg %p163
      $region18: #{tpu_custom_call.1} parent=5 // pred_check_branch
        %166 = sbr.rel (%p164) target = $region20
      $region19: #{tpu_custom_call.1} parent=5 // pred_region
        // Predicated region
        $region21: #{tpu_custom_call.1} parent=19 // pred_check
          %p167 = pneg %p54
        $region22: #{tpu_custom_call.1} parent=19 // pred_check_branch
          %169 = sbr.rel (%p167) target = $region24
        $region23: #{tpu_custom_call.1} parent=19 // pred_region
          %s170 = sand.u32 %s44, 1
          %s171 = scalar_lea.sflag [#allocation3], %s170
          %s172 = sand.u32 %s44, 1
          %s173 = smul.addr %s172, 128
          %s174 = scalar_lea.vmem [#allocation2], %s173
          %s175 = sadd.s32 %s27, %s28
          %s176 = smul.u32 32, %s175
          %s178 = ssub.s32 2048, 2048
          %179 = vsyncadd %s171, %s178
          %s180 = smul.addr %s176, 64
          %s181 = scalar_lea.hbm %s0, %s180
          %s182 = sshll.u32 %s174, 4
          %s183 = int_to_ptr.vmem [resolvable:$true] %s182
          %188 = dma.hbm_to_vmem [thread:$0]  %s181, 2048, %s183, %s171, 64, 64, 4
        $region24: #{tpu_custom_call.1} parent=19 // pred_fallthru
          _
      $region20: #{tpu_custom_call.1} parent=5 // pred_fallthru
        _
      %p189 = scmp.le.s32.totalorder 1, %s20
      %p190 = scmp.lt.s32.totalorder %s20, 3
      %p191 = pnand %p189, %p190
      %p192 = pneg %p191
      // Predicated region
      $region25: #{tpu_custom_call.1} parent=5 // pred_check
        _
      $region26: #{tpu_custom_call.1} parent=5 // pred_check_branch
        %194 = sbr.rel (%p191) target = $region28
      $region27: #{tpu_custom_call.1} parent=5 // pred_region
        %s195 = ssub.s32 %s20, 1
        %s196 = sand.u32 %s47, 1
        %s197 = scalar_lea.sflag [#allocation3], %s196
        %s198 = sand.u32 %s47, 1
        %s199 = smul.addr %s198, 128
        %s200 = scalar_lea.vmem [#allocation2], %s199
        // Predicated region
        $region29: #{tpu_custom_call.1} parent=27 // pred_check
          %p201 = pneg %p60
        $region30: #{tpu_custom_call.1} parent=27 // pred_check_branch
          %203 = sbr.rel (%p201) target = $region32
        $region31: #{tpu_custom_call.1} parent=27 // pred_region
          %204 = dma.done %s197, 2048
        $region32: #{tpu_custom_call.1} parent=27 // pred_fallthru
          _
        // Predicated region
        $region33: #{tpu_custom_call.1} parent=27 // pred_check
          %p205 = pneg %p81
        $region34: #{tpu_custom_call.1} parent=27 // pred_check_branch
          %207 = sbr.rel (%p205) target = $region36
        $region35: #{tpu_custom_call.1} parent=27 // pred_region
          %208 = dma.done [#allocation6], 1024
        $region36: #{tpu_custom_call.1} parent=27 // pred_fallthru
          _
        %s209 = sand.u32 %s47, 1
        %s210 = scalar_lea.sflag [#allocation3], %s209
        %s211 = sand.u32 %s47, 1
        %s212 = smul.addr %s211, 128
        %s213 = scalar_lea.vmem [#allocation2], %s212
        %p214 = pneg %p60
        %p215 = pneg %p57
        %p216 = pneg %p81
        %p217 = pneg %p78
        %p218 = pneg %p109
        %p219 = pneg %p106
        %s220 = sand.u32 %s96, 1
        %s221 = scalar_lea.sflag [#allocation4], %s220
        %s222 = sand.u32 %s96, 1
        %s223 = smul.addr %s222, 128
        %s224 = scalar_lea.vmem [#allocation7], %s223
        %p225 = pneg %p135
        %p226 = pneg %p132
        %s227 = sand.u32 %s122, 1
        %s228 = scalar_lea.sflag [#allocation9], %s227
        %s229 = sand.u32 %s122, 1
        %s230 = smul.addr %s229, 8
        %s231 = scalar_lea.vmem [#allocation8], %s230
        %s232 = sadd.s32 %s29, %s30
        %s233 = smul.u32 32, %s232
        %s234 = sadd.s32 %s29, %s30
        %s235 = smul.u32 32, %s234
        %v237 = vld [vmem:[%s200] sm:$0xf]
        %v238 = vld [vmem:[%s200 + $0x4] sm:$0xf]
        %v239 = vld [vmem:[%s200 + $0x8] sm:$0xf]
        %v240 = vld [vmem:[%s200 + $0xc] sm:$0xf]
        %v241 = vld [vmem:[%s200 + $0x10] sm:$0xf]
        %v242 = vld [vmem:[%s200 + $0x14] sm:$0xf]
        %v243 = vld [vmem:[%s200 + $0x18] sm:$0xf]
        %v244 = vld [vmem:[%s200 + $0x1c] sm:$0xf]
        %v245 = vld [vmem:[%s200 + $0x20] sm:$0xf]
        %v246 = vld [vmem:[%s200 + $0x24] sm:$0xf]
        %v247 = vld [vmem:[%s200 + $0x28] sm:$0xf]
        %v248 = vld [vmem:[%s200 + $0x2c] sm:$0xf]
        %v249 = vld [vmem:[%s200 + $0x30] sm:$0xf]
        %v250 = vld [vmem:[%s200 + $0x34] sm:$0xf]
        %v251 = vld [vmem:[%s200 + $0x38] sm:$0xf]
        %v252 = vld [vmem:[%s200 + $0x3c] sm:$0xf]
        %v253 = vld [vmem:[%s200 + $0x40] sm:$0xf]
        %v254 = vld [vmem:[%s200 + $0x44] sm:$0xf]
        %v255 = vld [vmem:[%s200 + $0x48] sm:$0xf]
        %v256 = vld [vmem:[%s200 + $0x4c] sm:$0xf]
        %v257 = vld [vmem:[%s200 + $0x50] sm:$0xf]
        %v258 = vld [vmem:[%s200 + $0x54] sm:$0xf]
        %v259 = vld [vmem:[%s200 + $0x58] sm:$0xf]
        %v260 = vld [vmem:[%s200 + $0x5c] sm:$0xf]
        %v261 = vld [vmem:[%s200 + $0x60] sm:$0xf]
        %v262 = vld [vmem:[%s200 + $0x64] sm:$0xf]
        %v263 = vld [vmem:[%s200 + $0x68] sm:$0xf]
        %v264 = vld [vmem:[%s200 + $0x6c] sm:$0xf]
        %v265 = vld [vmem:[%s200 + $0x70] sm:$0xf]
        %v266 = vld [vmem:[%s200 + $0x74] sm:$0xf]
        %v267 = vld [vmem:[%s200 + $0x78] sm:$0xf]
        %v268 = vld [vmem:[%s200 + $0x7c] sm:$0xf]
        %v269 = vld [vmem:[#allocation5] sm:$0xf]
        %v270 = vld [vmem:[#allocation5 + $0x4] sm:$0xf]
        %v271 = vld [vmem:[#allocation5 + $0x8] sm:$0xf]
        %v272 = vld [vmem:[#allocation5 + $0xc] sm:$0xf]
        %v273 = vld [vmem:[#allocation5 + $0x10] sm:$0xf]
        %v274 = vld [vmem:[#allocation5 + $0x14] sm:$0xf]
        %v275 = vld [vmem:[#allocation5 + $0x18] sm:$0xf]
        %v276 = vld [vmem:[#allocation5 + $0x1c] sm:$0xf]
        %v277 = vld [vmem:[#allocation5 + $0x20] sm:$0xf]
        %v278 = vld [vmem:[#allocation5 + $0x24] sm:$0xf]
        %v279 = vld [vmem:[#allocation5 + $0x28] sm:$0xf]
        %v280 = vld [vmem:[#allocation5 + $0x2c] sm:$0xf]
        %v281 = vld [vmem:[#allocation5 + $0x30] sm:$0xf]
        %v282 = vld [vmem:[#allocation5 + $0x34] sm:$0xf]
        %v283 = vld [vmem:[#allocation5 + $0x38] sm:$0xf]
        %v284 = vld [vmem:[#allocation5 + $0x3c] sm:$0xf]
        %v317 = vunpack.c.l.b16 %v237
        %v318 = vunpack.c.l.b16 %v238
        %v319 = vunpack.c.l.b16 %v239
        %v320 = vunpack.c.l.b16 %v240
        %v321 = vunpack.c.l.b16 %v241
        %v322 = vunpack.c.l.b16 %v242
        %v323 = vunpack.c.l.b16 %v243
        %v324 = vunpack.c.l.b16 %v244
        %v325 = vunpack.c.l.b16 %v245
        %v326 = vunpack.c.l.b16 %v246
        %v327 = vunpack.c.l.b16 %v247
        %v328 = vunpack.c.l.b16 %v248
        %v329 = vunpack.c.l.b16 %v249
        %v330 = vunpack.c.l.b16 %v250
        %v331 = vunpack.c.l.b16 %v251
        %v332 = vunpack.c.l.b16 %v252
        %v333 = vunpack.c.l.b16 %v253
        %v334 = vunpack.c.l.b16 %v254
        %v335 = vunpack.c.l.b16 %v255
        %v336 = vunpack.c.l.b16 %v256
        %v337 = vunpack.c.l.b16 %v257
        %v338 = vunpack.c.l.b16 %v258
        %v339 = vunpack.c.l.b16 %v259
        %v340 = vunpack.c.l.b16 %v260
        %v341 = vunpack.c.l.b16 %v261
        %v342 = vunpack.c.l.b16 %v262
        %v343 = vunpack.c.l.b16 %v263
        %v344 = vunpack.c.l.b16 %v264
        %v345 = vunpack.c.l.b16 %v265
        %v346 = vunpack.c.l.b16 %v266
        %v347 = vunpack.c.l.b16 %v267
        %v348 = vunpack.c.l.b16 %v268
        %v349 = vpack.c.b16 %v318, %v317
        %v350 = vpack.c.b16 %v320, %v319
        %v351 = vpack.c.b16 %v322, %v321
        %v352 = vpack.c.b16 %v324, %v323
        %v353 = vpack.c.b16 %v326, %v325
        %v354 = vpack.c.b16 %v328, %v327
        %v355 = vpack.c.b16 %v330, %v329
        %v356 = vpack.c.b16 %v332, %v331
        %v357 = vpack.c.b16 %v334, %v333
        %v358 = vpack.c.b16 %v336, %v335
        %v359 = vpack.c.b16 %v338, %v337
        %v360 = vpack.c.b16 %v340, %v339
        %v361 = vpack.c.b16 %v342, %v341
        %v362 = vpack.c.b16 %v344, %v343
        %v363 = vpack.c.b16 %v346, %v345
        %v364 = vpack.c.b16 %v348, %v347
        %v397 = vunpack.c.l.b16 %v269
        %v398 = vunpack.c.l.b16 %v270
        %v399 = vunpack.c.l.b16 %v271
        %v400 = vunpack.c.l.b16 %v272
        %v401 = vunpack.c.l.b16 %v273
        %v402 = vunpack.c.l.b16 %v274
        %v403 = vunpack.c.l.b16 %v275
        %v404 = vunpack.c.l.b16 %v276
        %v405 = vunpack.c.l.b16 %v277
        %v406 = vunpack.c.l.b16 %v278
        %v407 = vunpack.c.l.b16 %v279
        %v408 = vunpack.c.l.b16 %v280
        %v409 = vunpack.c.l.b16 %v281
        %v410 = vunpack.c.l.b16 %v282
        %v411 = vunpack.c.l.b16 %v283
        %v412 = vunpack.c.l.b16 %v284
        %v413 = vpack.c.b16 %v398, %v397
        %v414 = vpack.c.b16 %v400, %v399
        %v415 = vpack.c.b16 %v402, %v401
        %v416 = vpack.c.b16 %v404, %v403
        %v417 = vpack.c.b16 %v406, %v405
        %v418 = vpack.c.b16 %v408, %v407
        %v419 = vpack.c.b16 %v410, %v409
        %v420 = vpack.c.b16 %v412, %v411
        %429 = vmatprep.subr.bf16.mxu0 0
        %430 = vmatpush1.bf16.msra.mxu0 %v420
        %431 = vmatprep.subr.bf16.mxu0 0
        %432 = vmatpush1.bf16.msra.mxu0 %v419
        %433 = vmatprep.subr.bf16.mxu0 0
        %434 = vmatpush1.bf16.msra.mxu0 %v418
        %435 = vmatprep.subr.bf16.mxu0 0
        %436 = vmatpush1.bf16.msra.mxu0 %v417
        %437 = vmatprep.subr.bf16.mxu0 0
        %438 = vmatpush1.bf16.msra.mxu0 %v416
        %439 = vmatprep.subr.bf16.mxu0 0
        %440 = vmatpush1.bf16.msra.mxu0 %v415
        %441 = vmatprep.subr.bf16.mxu0 0
        %442 = vmatpush1.bf16.msra.mxu0 %v414
        %443 = vmatprep.subr.bf16.mxu0 0
        %444 = vmatpush1.bf16.msra.mxu0 %v413
        %445 = vmatprep.subr.bf16.mxu0 0
        %446 = vmatpush2.bf16.msra.mxu0 0
        %447 = vmatprep.subr.bf16.mxu0 0
        %448 = vmatpush2.bf16.msra.mxu0 0
        %449 = vmatprep.subr.bf16.mxu0 0
        %450 = vmatpush2.bf16.msra.mxu0 0
        %451 = vmatprep.subr.bf16.mxu0 0
        %452 = vmatpush2.bf16.msra.mxu0 0
        %453 = vmatprep.subr.bf16.mxu0 0
        %454 = vmatpush2.bf16.msra.mxu0 0
        %455 = vmatprep.subr.bf16.mxu0 0
        %456 = vmatpush2.bf16.msra.mxu0 0
        %457 = vmatprep.subr.bf16.mxu0 0
        %458 = vmatpush2.bf16.msra.mxu0 0
        %459 = vmatprep.subr.bf16.mxu0 0
        %460 = vmatpush2.bf16.msra.mxu0 0
        %461 = vmatprep.mubr.bf16.mxu0 0
        %462 = vmatmul.mubr.bf16.gmra.mxu0 %v349
        %v463 = vpop.f32.mrf.mxu0
        %v464 = vadd.f32 0.0, %v463
        %v465 = vpop.f32.mrf.mxu0
        %v466 = vpop.f32.mrf.mxu0
        %v467 = vadd.f32 0.0, %v466
        %v468 = vpop.f32.mrf.mxu0
        %469 = vmatprep.mubr.bf16.mxu0 0
        %470 = vmatmul.mubr.bf16.gmra.mxu0 %v350
        %v471 = vpop.f32.mrf.mxu0
        %v472 = vadd.f32 0.0, %v471
        %v473 = vpop.f32.mrf.mxu0
        %v474 = vpop.f32.mrf.mxu0
        %v475 = vadd.f32 0.0, %v474
        %v476 = vpop.f32.mrf.mxu0
        %477 = vmatprep.mubr.bf16.mxu0 0
        %478 = vmatmul.mubr.bf16.gmra.mxu0 %v351
        %v479 = vpop.f32.mrf.mxu0
        %v480 = vadd.f32 0.0, %v479
        %v481 = vpop.f32.mrf.mxu0
        %v482 = vpop.f32.mrf.mxu0
        %v483 = vadd.f32 0.0, %v482
        %v484 = vpop.f32.mrf.mxu0
        %485 = vmatprep.mubr.bf16.mxu0 0
        %486 = vmatmul.mubr.bf16.gmra.mxu0 %v352
        %v487 = vpop.f32.mrf.mxu0
        %v488 = vadd.f32 0.0, %v487
        %v489 = vpop.f32.mrf.mxu0
        %v490 = vpop.f32.mrf.mxu0
        %v491 = vadd.f32 0.0, %v490
        %v492 = vpop.f32.mrf.mxu0
        %493 = vmatprep.mubr.bf16.mxu0 0
        %494 = vmatmul.mubr.bf16.gmra.mxu0 %v353
        %v495 = vpop.f32.mrf.mxu0
        %v496 = vadd.f32 0.0, %v495
        %v497 = vpop.f32.mrf.mxu0
        %v498 = vpop.f32.mrf.mxu0
        %v499 = vadd.f32 0.0, %v498
        %v500 = vpop.f32.mrf.mxu0
        %501 = vmatprep.mubr.bf16.mxu0 0
        %502 = vmatmul.mubr.bf16.gmra.mxu0 %v354
        %v503 = vpop.f32.mrf.mxu0
        %v504 = vadd.f32 0.0, %v503
        %v505 = vpop.f32.mrf.mxu0
        %v506 = vpop.f32.mrf.mxu0
        %v507 = vadd.f32 0.0, %v506
        %v508 = vpop.f32.mrf.mxu0
        %509 = vmatprep.mubr.bf16.mxu0 0
        %510 = vmatmul.mubr.bf16.gmra.mxu0 %v355
        %v511 = vpop.f32.mrf.mxu0
        %v512 = vadd.f32 0.0, %v511
        %v513 = vpop.f32.mrf.mxu0
        %v514 = vpop.f32.mrf.mxu0
        %v515 = vadd.f32 0.0, %v514
        %v516 = vpop.f32.mrf.mxu0
        %517 = vmatprep.mubr.bf16.mxu0 0
        %518 = vmatmul.mubr.bf16.gmra.mxu0 %v356
        %v519 = vpop.f32.mrf.mxu0
        %v520 = vadd.f32 0.0, %v519
        %v521 = vpop.f32.mrf.mxu0
        %v522 = vpop.f32.mrf.mxu0
        %v523 = vadd.f32 0.0, %v522
        %v524 = vpop.f32.mrf.mxu0
        %525 = vmatprep.mubr.bf16.mxu0 0
        %526 = vmatmul.mubr.bf16.gmra.mxu0 %v357
        %v527 = vpop.f32.mrf.mxu0
        %v528 = vadd.f32 0.0, %v527
        %v529 = vpop.f32.mrf.mxu0
        %v530 = vpop.f32.mrf.mxu0
        %v531 = vadd.f32 0.0, %v530
        %v532 = vpop.f32.mrf.mxu0
        %533 = vmatprep.mubr.bf16.mxu0 0
        %534 = vmatmul.mubr.bf16.gmra.mxu0 %v358
        %v535 = vpop.f32.mrf.mxu0
        %v536 = vadd.f32 0.0, %v535
        %v537 = vpop.f32.mrf.mxu0
        %v538 = vpop.f32.mrf.mxu0
        %v539 = vadd.f32 0.0, %v538
        %v540 = vpop.f32.mrf.mxu0
        %541 = vmatprep.mubr.bf16.mxu0 0
        %542 = vmatmul.mubr.bf16.gmra.mxu0 %v359
        %v543 = vpop.f32.mrf.mxu0
        %v544 = vadd.f32 0.0, %v543
        %v545 = vpop.f32.mrf.mxu0
        %v546 = vpop.f32.mrf.mxu0
        %v547 = vadd.f32 0.0, %v546
        %v548 = vpop.f32.mrf.mxu0
        %549 = vmatprep.mubr.bf16.mxu0 0
        %550 = vmatmul.mubr.bf16.gmra.mxu0 %v360
        %v551 = vpop.f32.mrf.mxu0
        %v552 = vadd.f32 0.0, %v551
        %v553 = vpop.f32.mrf.mxu0
        %v554 = vpop.f32.mrf.mxu0
        %v555 = vadd.f32 0.0, %v554
        %v556 = vpop.f32.mrf.mxu0
        %557 = vmatprep.mubr.bf16.mxu0 0
        %558 = vmatmul.mubr.bf16.gmra.mxu0 %v361
        %v559 = vpop.f32.mrf.mxu0
        %v560 = vadd.f32 0.0, %v559
        %v561 = vpop.f32.mrf.mxu0
        %v562 = vpop.f32.mrf.mxu0
        %v563 = vadd.f32 0.0, %v562
        %v564 = vpop.f32.mrf.mxu0
        %565 = vmatprep.mubr.bf16.mxu0 0
        %566 = vmatmul.mubr.bf16.gmra.mxu0 %v362
        %v567 = vpop.f32.mrf.mxu0
        %v568 = vadd.f32 0.0, %v567
        %v569 = vpop.f32.mrf.mxu0
        %v570 = vpop.f32.mrf.mxu0
        %v571 = vadd.f32 0.0, %v570
        %v572 = vpop.f32.mrf.mxu0
        %573 = vmatprep.mubr.bf16.mxu0 0
        %574 = vmatmul.mubr.bf16.gmra.mxu0 %v363
        %v575 = vpop.f32.mrf.mxu0
        %v576 = vadd.f32 0.0, %v575
        %v577 = vpop.f32.mrf.mxu0
        %v578 = vpop.f32.mrf.mxu0
        %v579 = vadd.f32 0.0, %v578
        %v580 = vpop.f32.mrf.mxu0
        %581 = vmatprep.mubr.bf16.mxu0 0
        %582 = vmatmul.mubr.bf16.gmra.mxu0 %v364
        %v583 = vpop.f32.mrf.mxu0
        %v584 = vadd.f32 0.0, %v583
        %v585 = vpop.f32.mrf.mxu0
        %v586 = vpop.f32.mrf.mxu0
        %v587 = vadd.f32 0.0, %v586
        %v588 = vpop.f32.mrf.mxu0
        %589 = vdwg.mxu0
        %v590 = vpack.c.bf16 %v467, %v464
        %v591 = vpack.c.bf16 %v475, %v472
        %v592 = vpack.c.bf16 %v483, %v480
        %v593 = vpack.c.bf16 %v491, %v488
        %v594 = vpack.c.bf16 %v499, %v496
        %v595 = vpack.c.bf16 %v507, %v504
        %v596 = vpack.c.bf16 %v515, %v512
        %v597 = vpack.c.bf16 %v523, %v520
        %v598 = vpack.c.bf16 %v531, %v528
        %v599 = vpack.c.bf16 %v539, %v536
        %v600 = vpack.c.bf16 %v547, %v544
        %v601 = vpack.c.bf16 %v555, %v552
        %v602 = vpack.c.bf16 %v563, %v560
        %v603 = vpack.c.bf16 %v571, %v568
        %v604 = vpack.c.bf16 %v579, %v576
        %v605 = vpack.c.bf16 %v587, %v584
        %v622 = vunpack.c.l.b16 %v590
        %v623 = vunpack.c.h.b16 %v590
        %v624 = vunpack.c.l.b16 %v591
        %v625 = vunpack.c.h.b16 %v591
        %v626 = vunpack.c.l.b16 %v592
        %v627 = vunpack.c.h.b16 %v592
        %v628 = vunpack.c.l.b16 %v593
        %v629 = vunpack.c.h.b16 %v593
        %v630 = vunpack.c.l.b16 %v594
        %v631 = vunpack.c.h.b16 %v594
        %v632 = vunpack.c.l.b16 %v595
        %v633 = vunpack.c.h.b16 %v595
        %v634 = vunpack.c.l.b16 %v596
        %v635 = vunpack.c.h.b16 %v596
        %v636 = vunpack.c.l.b16 %v597
        %v637 = vunpack.c.h.b16 %v597
        %v638 = vunpack.c.l.b16 %v598
        %v639 = vunpack.c.h.b16 %v598
        %v640 = vunpack.c.l.b16 %v599
        %v641 = vunpack.c.h.b16 %v599
        %v642 = vunpack.c.l.b16 %v600
        %v643 = vunpack.c.h.b16 %v600
        %v644 = vunpack.c.l.b16 %v601
        %v645 = vunpack.c.h.b16 %v601
        %v646 = vunpack.c.l.b16 %v602
        %v647 = vunpack.c.h.b16 %v602
        %v648 = vunpack.c.l.b16 %v603
        %v649 = vunpack.c.h.b16 %v603
        %v650 = vunpack.c.l.b16 %v604
        %v651 = vunpack.c.h.b16 %v604
        %v652 = vunpack.c.l.b16 %v605
        %v653 = vunpack.c.h.b16 %v605
        %v654 = vpack.c.b16 %v622, %v622
        %v655 = vpack.c.b16 %v623, %v623
        %v656 = vpack.c.b16 %v624, %v624
        %v657 = vpack.c.b16 %v625, %v625
        %v658 = vpack.c.b16 %v626, %v626
        %v659 = vpack.c.b16 %v627, %v627
        %v660 = vpack.c.b16 %v628, %v628
        %v661 = vpack.c.b16 %v629, %v629
        %v662 = vpack.c.b16 %v630, %v630
        %v663 = vpack.c.b16 %v631, %v631
        %v664 = vpack.c.b16 %v632, %v632
        %v665 = vpack.c.b16 %v633, %v633
        %v666 = vpack.c.b16 %v634, %v634
        %v667 = vpack.c.b16 %v635, %v635
        %v668 = vpack.c.b16 %v636, %v636
        %v669 = vpack.c.b16 %v637, %v637
        %v670 = vpack.c.b16 %v638, %v638
        %v671 = vpack.c.b16 %v639, %v639
        %v672 = vpack.c.b16 %v640, %v640
        %v673 = vpack.c.b16 %v641, %v641
        %v674 = vpack.c.b16 %v642, %v642
        %v675 = vpack.c.b16 %v643, %v643
        %v676 = vpack.c.b16 %v644, %v644
        %v677 = vpack.c.b16 %v645, %v645
        %v678 = vpack.c.b16 %v646, %v646
        %v679 = vpack.c.b16 %v647, %v647
        %v680 = vpack.c.b16 %v648, %v648
        %v681 = vpack.c.b16 %v649, %v649
        %v682 = vpack.c.b16 %v650, %v650
        %v683 = vpack.c.b16 %v651, %v651
        %v684 = vpack.c.b16 %v652, %v652
        %v685 = vpack.c.b16 %v653, %v653
        %718 = vst [vmem:[%s224] sm:$0xf] %v654
        %719 = vst [vmem:[%s224 + $0x4] sm:$0xf] %v655
        %720 = vst [vmem:[%s224 + $0x8] sm:$0xf] %v656
        %721 = vst [vmem:[%s224 + $0xc] sm:$0xf] %v657
        %722 = vst [vmem:[%s224 + $0x10] sm:$0xf] %v658
        %723 = vst [vmem:[%s224 + $0x14] sm:$0xf] %v659
        %724 = vst [vmem:[%s224 + $0x18] sm:$0xf] %v660
        %725 = vst [vmem:[%s224 + $0x1c] sm:$0xf] %v661
        %726 = vst [vmem:[%s224 + $0x20] sm:$0xf] %v662
        %727 = vst [vmem:[%s224 + $0x24] sm:$0xf] %v663
        %728 = vst [vmem:[%s224 + $0x28] sm:$0xf] %v664
        %729 = vst [vmem:[%s224 + $0x2c] sm:$0xf] %v665
        %730 = vst [vmem:[%s224 + $0x30] sm:$0xf] %v666
        %731 = vst [vmem:[%s224 + $0x34] sm:$0xf] %v667
        %732 = vst [vmem:[%s224 + $0x38] sm:$0xf] %v668
        %733 = vst [vmem:[%s224 + $0x3c] sm:$0xf] %v669
        %734 = vst [vmem:[%s224 + $0x40] sm:$0xf] %v670
        %735 = vst [vmem:[%s224 + $0x44] sm:$0xf] %v671
        %736 = vst [vmem:[%s224 + $0x48] sm:$0xf] %v672
        %737 = vst [vmem:[%s224 + $0x4c] sm:$0xf] %v673
        %738 = vst [vmem:[%s224 + $0x50] sm:$0xf] %v674
        %739 = vst [vmem:[%s224 + $0x54] sm:$0xf] %v675
        %740 = vst [vmem:[%s224 + $0x58] sm:$0xf] %v676
        %741 = vst [vmem:[%s224 + $0x5c] sm:$0xf] %v677
        %742 = vst [vmem:[%s224 + $0x60] sm:$0xf] %v678
        %743 = vst [vmem:[%s224 + $0x64] sm:$0xf] %v679
        %744 = vst [vmem:[%s224 + $0x68] sm:$0xf] %v680
        %745 = vst [vmem:[%s224 + $0x6c] sm:$0xf] %v681
        %746 = vst [vmem:[%s224 + $0x70] sm:$0xf] %v682
        %747 = vst [vmem:[%s224 + $0x74] sm:$0xf] %v683
        %748 = vst [vmem:[%s224 + $0x78] sm:$0xf] %v684
        %749 = vst [vmem:[%s224 + $0x7c] sm:$0xf] %v685
        %p750 = scmp.eq.s32.totalorder %s30, 0
        // Predicated region
        $region37: #{tpu_custom_call.1} parent=27 // pred_check
          %p751 = pneg %p750
        $region38: #{tpu_custom_call.1} parent=27 // pred_check_branch
          %753 = sbr.rel (%p751) target = $region40
        $region39: #{tpu_custom_call.1} parent=27 // pred_region
          %754 = vst [vmem:[%s231] sm:$0xff] 0.0
        $region40: #{tpu_custom_call.1} parent=27 // pred_fallthru
          _
        %v755 = vld [vmem:[%s231] sm:$0xff]
        %v756 = vadd.f32 %v464, %v467
        %v757 = vadd.f32 %v756, %v472
        %v758 = vadd.f32 %v757, %v475
        %v759 = vadd.f32 %v758, %v480
        %v760 = vadd.f32 %v759, %v483
        %v761 = vadd.f32 %v760, %v488
        %v762 = vadd.f32 %v761, %v491
        %v763 = vadd.f32 %v762, %v496
        %v764 = vadd.f32 %v763, %v499
        %v765 = vadd.f32 %v764, %v504
        %v766 = vadd.f32 %v765, %v507
        %v767 = vadd.f32 %v766, %v512
        %v768 = vadd.f32 %v767, %v515
        %v769 = vadd.f32 %v768, %v520
        %v770 = vadd.f32 %v769, %v523
        %v771 = vadd.f32 %v770, %v528
        %v772 = vadd.f32 %v771, %v531
        %v773 = vadd.f32 %v772, %v536
        %v774 = vadd.f32 %v773, %v539
        %v775 = vadd.f32 %v774, %v544
        %v776 = vadd.f32 %v775, %v547
        %v777 = vadd.f32 %v776, %v552
        %v778 = vadd.f32 %v777, %v555
        %v779 = vadd.f32 %v778, %v560
        %v780 = vadd.f32 %v779, %v563
        %v781 = vadd.f32 %v780, %v568
        %v782 = vadd.f32 %v781, %v571
        %v783 = vadd.f32 %v782, %v576
        %v784 = vadd.f32 %v783, %v579
        %v785 = vadd.f32 %v784, %v584
        %v786 = vadd.f32 %v785, %v587
        %v787 = vrot.slane %v786, 4
        %v788 = vadd.f32 %v786, %v787
        %v789 = vrot.slane %v788, 2
        %v790 = vadd.f32 %v788, %v789
        %v791 = vrot.slane %v790, 1
        %v792 = vadd.f32 %v790, %v791
        %v793 = vmul.f32 %v464, %v464
        %v794 = vmul.f32 %v467, %v467
        %v795 = vmul.f32 %v472, %v472
        %v796 = vmul.f32 %v475, %v475
        %v797 = vmul.f32 %v480, %v480
        %v798 = vmul.f32 %v483, %v483
        %v799 = vmul.f32 %v488, %v488
        %v800 = vmul.f32 %v491, %v491
        %v801 = vmul.f32 %v496, %v496
        %v802 = vmul.f32 %v499, %v499
        %v803 = vmul.f32 %v504, %v504
        %v804 = vmul.f32 %v507, %v507
        %v805 = vmul.f32 %v512, %v512
        %v806 = vmul.f32 %v515, %v515
        %v807 = vmul.f32 %v520, %v520
        %v808 = vmul.f32 %v523, %v523
        %v809 = vmul.f32 %v528, %v528
        %v810 = vmul.f32 %v531, %v531
        %v811 = vmul.f32 %v536, %v536
        %v812 = vmul.f32 %v539, %v539
        %v813 = vmul.f32 %v544, %v544
        %v814 = vmul.f32 %v547, %v547
        %v815 = vmul.f32 %v552, %v552
        %v816 = vmul.f32 %v555, %v555
        %v817 = vmul.f32 %v560, %v560
        %v818 = vmul.f32 %v563, %v563
        %v819 = vmul.f32 %v568, %v568
        %v820 = vmul.f32 %v571, %v571
        %v821 = vmul.f32 %v576, %v576
        %v822 = vmul.f32 %v579, %v579
        %v823 = vmul.f32 %v584, %v584
        %v824 = vmul.f32 %v587, %v587
        %v825 = vadd.f32 %v793, %v794
        %v826 = vadd.f32 %v825, %v795
        %v827 = vadd.f32 %v826, %v796
        %v828 = vadd.f32 %v827, %v797
        %v829 = vadd.f32 %v828, %v798
        %v830 = vadd.f32 %v829, %v799
        %v831 = vadd.f32 %v830, %v800
        %v832 = vadd.f32 %v831, %v801
        %v833 = vadd.f32 %v832, %v802
        %v834 = vadd.f32 %v833, %v803
        %v835 = vadd.f32 %v834, %v804
        %v836 = vadd.f32 %v835, %v805
        %v837 = vadd.f32 %v836, %v806
        %v838 = vadd.f32 %v837, %v807
        %v839 = vadd.f32 %v838, %v808
        %v840 = vadd.f32 %v839, %v809
        %v841 = vadd.f32 %v840, %v810
        %v842 = vadd.f32 %v841, %v811
        %v843 = vadd.f32 %v842, %v812
        %v844 = vadd.f32 %v843, %v813
        %v845 = vadd.f32 %v844, %v814
        %v846 = vadd.f32 %v845, %v815
        %v847 = vadd.f32 %v846, %v816
        %v848 = vadd.f32 %v847, %v817
        %v849 = vadd.f32 %v848, %v818
        %v850 = vadd.f32 %v849, %v819
        %v851 = vadd.f32 %v850, %v820
        %v852 = vadd.f32 %v851, %v821
        %v853 = vadd.f32 %v852, %v822
        %v854 = vadd.f32 %v853, %v823
        %v855 = vadd.f32 %v854, %v824
        %v856 = vrot.slane %v855, 4
        %v857 = vadd.f32 %v855, %v856
        %v858 = vrot.slane %v857, 2
        %v859 = vadd.f32 %v857, %v858
        %v860 = vrot.slane %v859, 1
        %v861 = vadd.f32 %v859, %v860
        %vm862 = vcmask 1040384
        %v863 = vsel %vm862, %v792, %v861
        %vm864 = vcmask 1041408
        %v865 = vsel %vm864, %v863, 0.0
        %v866 = vadd.f32 %v755, %v865
        %867 = vst [vmem:[%s231] sm:$0xff] %v866
        %s868 = sand.u32 %s96, 1
        %s869 = scalar_lea.sflag [#allocation4], %s868
        %s870 = sand.u32 %s96, 1
        %s871 = smul.addr %s870, 128
        %s872 = scalar_lea.vmem [#allocation7], %s871
        %s873 = sand.u32 %s122, 1
        %s874 = scalar_lea.sflag [#allocation9], %s873
        %s875 = sand.u32 %s122, 1
        %s876 = smul.addr %s875, 8
        %s877 = scalar_lea.vmem [#allocation8], %s876
        // Predicated region
        $region41: #{tpu_custom_call.1} parent=27 // pred_check
          %p878 = pneg %p106
        $region42: #{tpu_custom_call.1} parent=27 // pred_check_branch
          %880 = sbr.rel (%p878) target = $region44
        $region43: #{tpu_custom_call.1} parent=27 // pred_region
          %s881 = sadd.s32 %s29, %s30
          %s882 = smul.u32 32, %s881
          %s884 = ssub.s32 2048, 2048
          %885 = vsyncadd %s869, %s884
          %s886 = smul.addr %s882, 64
          %s887 = scalar_lea.hbm %s2, %s886
          %s888 = sshll.u32 %s872, 4
          %s889 = int_to_ptr.vmem [resolvable:$true] %s888
          %894 = dma.vmem_to_hbm [thread:$0]  %s889, 2048, %s887, %s869, 64, 64, 4
        $region44: #{tpu_custom_call.1} parent=27 // pred_fallthru
          _
        // Predicated region
        $region45: #{tpu_custom_call.1} parent=27 // pred_check
          %p895 = pneg %p132
        $region46: #{tpu_custom_call.1} parent=27 // pred_check_branch
          %897 = sbr.rel (%p895) target = $region48
        $region47: #{tpu_custom_call.1} parent=27 // pred_region
          %s899 = ssub.s32 128, 128
          %900 = vsyncadd %s874, %s899
          %s901 = smul.addr %s29, 128
          %s902 = scalar_lea.hbm %s3, %s901
          %s904 = sshll.u32 %s877, 4
          %s905 = int_to_ptr.vmem [resolvable:$true] %s904
          %907 = dma.vmem_to_hbm [thread:$0]  %s905, 128, %s902, %s874
        $region48: #{tpu_custom_call.1} parent=27 // pred_fallthru
          _
      $region28: #{tpu_custom_call.1} parent=5 // pred_fallthru
        _
      %p908 = scmp.le.s32.totalorder 2, %s20
      // Predicated region
      $region49: #{tpu_custom_call.1} parent=5 // pred_check
        %p909 = pneg %p908
      $region50: #{tpu_custom_call.1} parent=5 // pred_check_branch
        %911 = sbr.rel (%p909) target = $region52
      $region51: #{tpu_custom_call.1} parent=5 // pred_region
        %s912 = ssub.s32 %s20, 2
        // Predicated region
        $region53: #{tpu_custom_call.1} parent=51 // pred_check
          %p913 = pneg %p112
        $region54: #{tpu_custom_call.1} parent=51 // pred_check_branch
          %915 = sbr.rel (%p913) target = $region56
        $region55: #{tpu_custom_call.1} parent=51 // pred_region
          %s916 = sand.u32 %s97, 1
          %s917 = scalar_lea.sflag [#allocation4], %s916
          %s918 = sand.u32 %s97, 1
          %s919 = smul.addr %s918, 128
          %s920 = scalar_lea.vmem [#allocation7], %s919
          %921 = dma.done %s917, 2048
        $region56: #{tpu_custom_call.1} parent=51 // pred_fallthru
          _
        // Predicated region
        $region57: #{tpu_custom_call.1} parent=51 // pred_check
          %p922 = pneg %p138
        $region58: #{tpu_custom_call.1} parent=51 // pred_check_branch
          %924 = sbr.rel (%p922) target = $region60
        $region59: #{tpu_custom_call.1} parent=51 // pred_region
          %s925 = sand.u32 %s123, 1
          %s926 = scalar_lea.sflag [#allocation9], %s925
          %s927 = sand.u32 %s123, 1
          %s928 = smul.addr %s927, 8
          %s929 = scalar_lea.vmem [#allocation8], %s928
          %930 = dma.done %s926, 128
        $region60: #{tpu_custom_call.1} parent=51 // pred_fallthru
          _
      $region52: #{tpu_custom_call.1} parent=5 // pred_fallthru
        _
    $region6: #{tpu_custom_call.1} parent=1 // loop_footer
      %s24 = sadd.s32 1, %s20
    $region7: #{tpu_custom_call.1} parent=1 // loop_footer_branch
      %19 = sbr.rel target = $region3
    $region8: #{tpu_custom_call.1} parent=1 // loop_exit
      _
    %931 = vsyncpa [#allocation3], 1
    %s932 = scalar_lea.sflag [#allocation3], 1
    %933 = vsyncpa %s932, 1
    %934 = vsyncpa [#allocation6], 1
    %935 = vsyncpa [#allocation4], 1
    %s936 = scalar_lea.sflag [#allocation4], 1
    %937 = vsyncpa %s936, 1
    %938 = vsyncpa [#allocation9], 1
    %s939 = scalar_lea.sflag [#allocation9], 1
    %940 = vsyncpa %s939, 1

</llo_original>
